<compile_context>
chip_gen: v7x
topology: tpu7x:2x2x1
jax: 0.10.0
libtpu: 0.0.40
codegen_flags: <defaults>
</compile_context>

<pallas_src>
import functools

import jax
import jax.numpy as jnp
from jax.experimental import pallas as pl
from jax.experimental.pallas import tpu as pltpu


def gcn_predictor_kernel(a_ref, x_ref, w_ref, b_ref, oneh_ref, invc_ref, out_ref,
                         *, c_in_pad, hidden):
    a = a_ref[...]          # [N, N]         bf16 normalized (block-diag) adjacency
    x = x_ref[...]          # [N, c_in_pad]  bf16 zero-padded node features
    w = w_ref[...]          # [c_in_pad + 2*hidden, hidden] bf16 weight slab
    b = b_ref[...]          # [8, hidden] f32 bias slab (rows 0,1,2 used)

    # Zero-cost views: every offset is a multiple of 16 rows on a bf16 array.
    w1 = w[0:c_in_pad, :]                               # [c_in_pad, hidden]
    w2 = w[c_in_pad:c_in_pad + hidden, :]               # [hidden, hidden]
    wfc = w[c_in_pad + hidden:c_in_pad + 2 * hidden, :]  # [hidden, hidden] (cols padded)
    b1, b2, bfc = b[0:1, :], b[1:2, :], b[2:3, :]

    f32, bf16 = jnp.float32, jnp.bfloat16

    # ---- GCNConv 1: A_hat @ (x @ W1) + b1, then ReLU ----
    h = jnp.dot(x, w1, preferred_element_type=f32)                       # [N, hidden]
    h = jnp.dot(a, h.astype(bf16), preferred_element_type=f32) + b1
    h = jnp.maximum(h, 0.0)

    # ---- GCNConv 2: A_hat @ (h @ W2) + b2 ----
    h = jnp.dot(h.astype(bf16), w2, preferred_element_type=f32)
    h = jnp.dot(a, h.astype(bf16), preferred_element_type=f32) + b2

    # ---- global_mean_pool: exact 0/1 one-hot (bf16) dot, f32 1/count scale ----
    pooled = jnp.dot(oneh_ref[...], h.astype(bf16),
                     preferred_element_type=f32) * invc_ref[...]         # [G, hidden]

    # ---- fc: pooled @ Wfc + bfc; columns >= num_classes are zero-padded ----
    out_ref[...] = jnp.dot(pooled.astype(bf16), wfc,
                           preferred_element_type=f32) + bfc             # [G, hidden]


def _round_up(v, m):
    return (v + m - 1) // m * m


def build_graph_operators(edge_index, batch, num_nodes, num_graphs):
    """Hoisted O(N^2) graph preprocessing — run ONCE per static graph batch."""
    src, dst = edge_index[0], edge_index[1]
    adj = jnp.zeros((num_nodes, num_nodes), jnp.float32).at[dst, src].add(1.0)
    adj = adj + jnp.eye(num_nodes, dtype=jnp.float32)
    deg = adj.sum(axis=1)                                   # in-degree incl. self-loop
    dinv = jnp.where(deg > 0, 1.0 / jnp.sqrt(deg), 0.0)
    # TODO(synk): keep A_hat in f32 if downstream needs tighter than ~1e-2 accuracy.
    a_hat = (dinv[:, None] * adj * dinv[None, :]).astype(jnp.bfloat16)

    onehot = (batch[None, :] == jnp.arange(num_graphs)[:, None]).astype(jnp.float32)
    counts = jnp.maximum(onehot.sum(axis=1, keepdims=True), 1.0)
    inv_counts = 1.0 / counts                               # [G, 1] f32 (exact means)
    return a_hat, onehot.astype(jnp.bfloat16), inv_counts


def pack_params(params, c_in, hidden, num_classes):
    """bf16 weight slab (16-row-aligned sub-blocks) + tiny f32 bias slab."""
    w1, b1, w2, b2, wfc, bfc = params
    assert hidden % 16 == 0 and num_classes <= hidden
    c_in_pad = _round_up(c_in, 16)

    def pad_to(m, rows, cols):
        return jnp.pad(m, ((0, rows - m.shape[0]), (0, cols - m.shape[1])))

    w_slab = jnp.concatenate(
        [pad_to(w1, c_in_pad, hidden),      # rows [0, c_in_pad)
         pad_to(w2, hidden, hidden),        # rows [c_in_pad, c_in_pad+hidden)
         pad_to(wfc, hidden, hidden)],      # rows [c_in_pad+hidden, c_in_pad+2*hidden)
        axis=0).astype(jnp.bfloat16)
    b_slab = jnp.concatenate(
        [pad_to(b1, 1, hidden), pad_to(b2, 1, hidden), pad_to(bfc, 1, hidden),
         jnp.zeros((5, hidden), jnp.float32)], axis=0).astype(jnp.float32)
    return w_slab, b_slab, c_in_pad


def gcn_predictor_forward(x, a_hat, onehot, inv_counts, w_slab, b_slab,
                          c_in_pad, hidden, num_classes):
    """Per-forward path: one pallas_call, full-resident (no grid) at this size."""
    num_graphs = onehot.shape[0]
    x_pad = jnp.pad(x, ((0, 0), (0, c_in_pad - x.shape[1]))).astype(jnp.bfloat16)

    full = lambda shape: pl.BlockSpec(shape, lambda: tuple(0 for _ in shape))
    kernel = functools.partial(gcn_predictor_kernel,
                               c_in_pad=c_in_pad, hidden=hidden)
    logits = pl.pallas_call(
        kernel,
        out_shape=jax.ShapeDtypeStruct((num_graphs, hidden), jnp.float32),
        grid=(),
        in_specs=[full(a_hat.shape), full(x_pad.shape), full(w_slab.shape),
                  full(b_slab.shape), full(onehot.shape), full(inv_counts.shape)],
        out_specs=full((num_graphs, hidden)),
        # Lifts v5e's 16 MiB scoped VMEM default; no-op on v6e/v7x.
        compiler_params=pltpu.CompilerParams(vmem_limit_bytes=32 << 20),
    )(a_hat, x_pad, w_slab, b_slab, onehot, inv_counts)
    return logits[:, :num_classes]


def reference_forward(x, edge_index, batch, params, num_graphs):
    """Pure-JAX f32 reference for validation."""
    n = x.shape[0]
    src, dst = edge_index[0], edge_index[1]
    adj = jnp.zeros((n, n), jnp.float32).at[dst, src].add(1.0) + jnp.eye(n)
    deg = adj.sum(axis=1)
    dinv = jnp.where(deg > 0, 1.0 / jnp.sqrt(deg), 0.0)
    a_hat = dinv[:, None] * adj * dinv[None, :]
    w1, b1, w2, b2, wfc, bfc = params
    h = jnp.maximum(a_hat @ (x @ w1) + b1, 0.0)
    h = a_hat @ (h @ w2) + b2
    onehot = (batch[None, :] == jnp.arange(num_graphs)[:, None]).astype(jnp.float32)
    pool = onehot / jnp.maximum(onehot.sum(axis=1, keepdims=True), 1.0)
    return (pool @ h) @ wfc + bfc


if __name__ == "__main__":
    # 4 graphs x 32 nodes (N = 128, one MXU tile), in_channels=8, num_classes=4.
    in_channels, hidden, num_classes = 8, 16, 4
    nodes_per_graph, num_graphs = 32, 4
    n = nodes_per_graph * num_graphs

    key = jax.random.PRNGKey(0)
    kx, k1, k2, k3, k4, k5, k6 = jax.random.split(key, 7)

    x = jax.random.normal(kx, (n, in_channels), jnp.float32)

    # Undirected ring within each graph (both edge directions stored).
    edges = []
    for g in range(num_graphs):
        base = g * nodes_per_graph
        for i in range(nodes_per_graph):
            u = base + i
            v = base + (i + 1) % nodes_per_graph
            edges.append((u, v))
            edges.append((v, u))
    edge_index = jnp.array(edges, dtype=jnp.int32).T          # [2, E]
    batch = jnp.repeat(jnp.arange(num_graphs, dtype=jnp.int32), nodes_per_graph)

    # Deterministic parameter init (glorot-like scale).
    def glorot(k, shape):
        fan_in, fan_out = shape
        s = jnp.sqrt(6.0 / (fan_in + fan_out))
        return jax.random.uniform(k, shape, jnp.float32, -s, s)

    params = (
        glorot(k1, (in_channels, hidden)),                            # W1
        jax.random.normal(k2, (1, hidden), jnp.float32) * 0.1,        # b1
        glorot(k3, (hidden, hidden)),                                 # W2
        jax.random.normal(k4, (1, hidden), jnp.float32) * 0.1,        # b2
        glorot(k5, (hidden, num_classes)),                            # Wfc
        jax.random.normal(k6, (1, num_classes), jnp.float32) * 0.1,   # bfc
    )

    # Hoisted, once-per-graph-batch preprocessing (not on the per-forward path).
    a_hat, onehot, inv_counts = build_graph_operators(edge_index, batch, n, num_graphs)
    w_slab, b_slab, c_in_pad = pack_params(params, in_channels, hidden, num_classes)

    out = gcn_predictor_forward(x, a_hat, onehot, inv_counts, w_slab, b_slab,
                                c_in_pad, hidden, num_classes)
    out = jax.block_until_ready(out)

    ref = reference_forward(x, edge_index, batch, params, num_graphs)
    assert out.shape == (num_graphs, num_classes)
    # bf16 adjacency / activations / pool dot -> looser tolerance than pure f32.
    assert jnp.allclose(out, ref, atol=5e-2, rtol=5e-2), (out, ref)
    print("KERNEL_OK")
</pallas_src>

<mosaic_0001>
module attributes {stable_mosaic.version = 11 : i64} {
  func.func @gcn_predictor_kernel(%arg0: memref<128x128xbf16, #tpu.memory_space<vmem>>, %arg1: memref<128x16xbf16, #tpu.memory_space<vmem>>, %arg2: memref<48x16xbf16, #tpu.memory_space<vmem>>, %arg3: memref<8x16xf32, #tpu.memory_space<vmem>>, %arg4: memref<4x128xbf16, #tpu.memory_space<vmem>>, %arg5: memref<4x1xf32, #tpu.memory_space<vmem>>, %arg6: memref<4x16xf32, #tpu.memory_space<vmem>>) attributes {dimension_semantics = [], scalar_prefetch = 0 : i64, scratch_operands = 0 : i64, tpu.core_type = #tpu.core_type<tc>} {
    %c0 = arith.constant 0 : index
    %c0_0 = arith.constant 0 : index
    %0 = vector.load %arg0[%c0, %c0_0] : memref<128x128xbf16, #tpu.memory_space<vmem>>, vector<128x128xbf16>
    %c0_1 = arith.constant 0 : index
    %c0_2 = arith.constant 0 : index
    %1 = vector.load %arg1[%c0_1, %c0_2] : memref<128x16xbf16, #tpu.memory_space<vmem>>, vector<128x16xbf16>
    %c0_3 = arith.constant 0 : index
    %c0_4 = arith.constant 0 : index
    %2 = vector.load %arg2[%c0_3, %c0_4] : memref<48x16xbf16, #tpu.memory_space<vmem>>, vector<48x16xbf16>
    %c0_5 = arith.constant 0 : index
    %c0_6 = arith.constant 0 : index
    %3 = vector.load %arg3[%c0_5, %c0_6] : memref<8x16xf32, #tpu.memory_space<vmem>>, vector<8x16xf32>
    %4 = vector.extract_strided_slice %2 {offsets = [0, 0], sizes = [16, 16], strides = [1, 1]} : vector<48x16xbf16> to vector<16x16xbf16>
    %5 = vector.extract_strided_slice %2 {offsets = [16, 0], sizes = [16, 16], strides = [1, 1]} : vector<48x16xbf16> to vector<16x16xbf16>
    %6 = vector.extract_strided_slice %2 {offsets = [32, 0], sizes = [16, 16], strides = [1, 1]} : vector<48x16xbf16> to vector<16x16xbf16>
    %7 = vector.extract_strided_slice %3 {offsets = [0, 0], sizes = [1, 16], strides = [1, 1]} : vector<8x16xf32> to vector<1x16xf32>
    %8 = vector.extract_strided_slice %3 {offsets = [1, 0], sizes = [1, 16], strides = [1, 1]} : vector<8x16xf32> to vector<1x16xf32>
    %9 = vector.extract_strided_slice %3 {offsets = [2, 0], sizes = [1, 16], strides = [1, 1]} : vector<8x16xf32> to vector<1x16xf32>
    %cst = arith.constant dense<0.000000e+00> : vector<128x16xf32>
    %10 = tpu.matmul %1, %4, %cst {dimension_numbers = #tpu.dot_dimension_numbers<[1], [0], [0], [1], [0, 0, 1, 1], [], []>} : vector<128x16xbf16>, vector<16x16xbf16>, vector<128x16xf32> -> vector<128x16xf32>
    %11 = arith.truncf %10 : vector<128x16xf32> to vector<128x16xbf16>
    %cst_7 = arith.constant dense<0.000000e+00> : vector<128x16xf32>
    %12 = tpu.matmul %0, %11, %cst_7 {dimension_numbers = #tpu.dot_dimension_numbers<[1], [0], [0], [1], [0, 0, 1, 1], [], []>} : vector<128x128xbf16>, vector<128x16xbf16>, vector<128x16xf32> -> vector<128x16xf32>
    %13 = vector.broadcast %7 : vector<1x16xf32> to vector<128x16xf32>
    %14 = arith.addf %12, %13 : vector<128x16xf32>
    %cst_8 = arith.constant 0.000000e+00 : f32
    %15 = vector.broadcast %cst_8 : f32 to vector<128x16xf32>
    %16 = arith.maximumf %14, %15 : vector<128x16xf32>
    %17 = arith.truncf %16 : vector<128x16xf32> to vector<128x16xbf16>
    %cst_9 = arith.constant dense<0.000000e+00> : vector<128x16xf32>
    %18 = tpu.matmul %17, %5, %cst_9 {dimension_numbers = #tpu.dot_dimension_numbers<[1], [0], [0], [1], [0, 0, 1, 1], [], []>} : vector<128x16xbf16>, vector<16x16xbf16>, vector<128x16xf32> -> vector<128x16xf32>
    %19 = arith.truncf %18 : vector<128x16xf32> to vector<128x16xbf16>
    %cst_10 = arith.constant dense<0.000000e+00> : vector<128x16xf32>
    %20 = tpu.matmul %0, %19, %cst_10 {dimension_numbers = #tpu.dot_dimension_numbers<[1], [0], [0], [1], [0, 0, 1, 1], [], []>} : vector<128x128xbf16>, vector<128x16xbf16>, vector<128x16xf32> -> vector<128x16xf32>
    %21 = vector.broadcast %8 : vector<1x16xf32> to vector<128x16xf32>
    %22 = arith.addf %20, %21 : vector<128x16xf32>
    %c0_11 = arith.constant 0 : index
    %c0_12 = arith.constant 0 : index
    %23 = vector.load %arg4[%c0_11, %c0_12] : memref<4x128xbf16, #tpu.memory_space<vmem>>, vector<4x128xbf16>
    %24 = arith.truncf %22 : vector<128x16xf32> to vector<128x16xbf16>
    %cst_13 = arith.constant dense<0.000000e+00> : vector<4x16xf32>
    %25 = tpu.matmul %23, %24, %cst_13 {dimension_numbers = #tpu.dot_dimension_numbers<[1], [0], [0], [1], [0, 0, 1, 1], [], []>} : vector<4x128xbf16>, vector<128x16xbf16>, vector<4x16xf32> -> vector<4x16xf32>
    %c0_14 = arith.constant 0 : index
    %c0_15 = arith.constant 0 : index
    %26 = vector.load %arg5[%c0_14, %c0_15] : memref<4x1xf32, #tpu.memory_space<vmem>>, vector<4x1xf32>
    %27 = vector.broadcast %26 : vector<4x1xf32> to vector<4x16xf32>
    %28 = arith.mulf %25, %27 : vector<4x16xf32>
    %29 = arith.truncf %28 : vector<4x16xf32> to vector<4x16xbf16>
    %cst_16 = arith.constant dense<0.000000e+00> : vector<4x16xf32>
    %30 = tpu.matmul %29, %6, %cst_16 {dimension_numbers = #tpu.dot_dimension_numbers<[1], [0], [0], [1], [0, 0, 1, 1], [], []>} : vector<4x16xbf16>, vector<16x16xbf16>, vector<4x16xf32> -> vector<4x16xf32>
    %31 = vector.broadcast %9 : vector<1x16xf32> to vector<4x16xf32>
    %32 = arith.addf %30, %31 : vector<4x16xf32>
    %c0_17 = arith.constant 0 : index
    %c0_18 = arith.constant 0 : index
    %33 = vector.load %arg6[%c0_17, %c0_18] : memref<4x16xf32, #tpu.memory_space<vmem>>, vector<4x16xf32>
    tpu.vector_store %arg6[%c0_17, %c0_18], %32 {strides = array<i32>} : memref<4x16xf32, #tpu.memory_space<vmem>>, vector<4x16xf32>,
    return
  }
}

</mosaic_0001>

<llo_original>
// kernel: tpu_custom_call.1
$region0: #{tpu_custom_call.1}
  #allocation0 [shape = 'u32[]', space=smem, size = 0x4, offset = 0x4, fixed_abs, tag = 'smem constant byte address 0x4 - core index']
  #allocation1 [shape = 'u32[144,128]{1,0:T(1,128)}', space=vmem, size = 0x12000, scoped, tag = 'internal scratch']
  %s0 = inlined_call_operand.vmem [shape: bf16[128,128], index: 0, kind: input, shape index: {}]
  %s1 = inlined_call_operand.vmem [shape: bf16[128,16], index: 1, kind: input, shape index: {}]
  %s2 = inlined_call_operand.vmem [shape: bf16[48,16], index: 2, kind: input, shape index: {}]
  %s3 = inlined_call_operand.vmem [shape: f32[8,16], index: 3, kind: input, shape index: {}]
  %s4 = inlined_call_operand.vmem [shape: bf16[4,128], index: 4, kind: input, shape index: {}]
  %s5 = inlined_call_operand.vmem [shape: f32[4,1], index: 5, kind: input, shape index: {}]
  %s6 = inlined_call_operand.hbm [shape: f32[4,16], index: 6, kind: output, shape index: {}]
  %s7 = sld [smem:[#allocation0]]
  $region34: #{tpu_custom_call.1} parent=0
    _
  %s9 = ssub.s32 1, %s7
  %s10 = scalar_select 0, %s9, %s7
  $region1: #{tpu_custom_call.1} parent=0
    #allocation2 [shape = 'u8[2048]{0}', space=vmem, size = 0x800, scoped, tag = 'output window, operand 0, single buffered']
    #allocation3 [shape = 's32[1]{0}', space=sflag, size = 0x4, scoped, tag = 'scoped memory for tpu_custom_call.1']
    %11 = vsyncpa [#allocation3], 0
    // Predicated region
    $region2: #{tpu_custom_call.1} parent=1 // pred_check
      _
    $region3: #{tpu_custom_call.1} parent=1 // pred_check_branch
      %13 = sbr.rel (0) target = $region5
    $region4: #{tpu_custom_call.1} parent=1 // pred_region
      _
    $region5: #{tpu_custom_call.1} parent=1 // pred_fallthru
      _
    // Predicated region
    $region6: #{tpu_custom_call.1} parent=1 // pred_check
      _
    $region7: #{tpu_custom_call.1} parent=1 // pred_check_branch
      %15 = sbr.rel (0) target = $region9
    $region8: #{tpu_custom_call.1} parent=1 // pred_region
      _
    $region9: #{tpu_custom_call.1} parent=1 // pred_fallthru
      _
    // Predicated region
    $region10: #{tpu_custom_call.1} parent=1 // pred_check
      _
    $region11: #{tpu_custom_call.1} parent=1 // pred_check_branch
      %17 = sbr.rel (0) target = $region13
    $region12: #{tpu_custom_call.1} parent=1 // pred_region
      _
    $region13: #{tpu_custom_call.1} parent=1 // pred_fallthru
      _
    // Predicated region
    $region14: #{tpu_custom_call.1} parent=1 // pred_check
      _
    $region15: #{tpu_custom_call.1} parent=1 // pred_check_branch
      %19 = sbr.rel (0) target = $region17
    $region16: #{tpu_custom_call.1} parent=1 // pred_region
      _
    $region17: #{tpu_custom_call.1} parent=1 // pred_fallthru
      _
    // Predicated region
    $region18: #{tpu_custom_call.1} parent=1 // pred_check
      _
    $region19: #{tpu_custom_call.1} parent=1 // pred_check_branch
      %21 = sbr.rel (0) target = $region21
    $region20: #{tpu_custom_call.1} parent=1 // pred_region
      _
    $region21: #{tpu_custom_call.1} parent=1 // pred_fallthru
      _
    // Predicated region
    $region22: #{tpu_custom_call.1} parent=1 // pred_check
      _
    $region23: #{tpu_custom_call.1} parent=1 // pred_check_branch
      %23 = sbr.rel (0) target = $region25
    $region24: #{tpu_custom_call.1} parent=1 // pred_region
      _
    $region25: #{tpu_custom_call.1} parent=1 // pred_fallthru
      _
    %v25 = vld [vmem:[%s0] sm:$0xf]
    %v26 = vld [vmem:[%s0 + $0x4] sm:$0xf]
    %v27 = vld [vmem:[%s0 + $0x8] sm:$0xf]
    %v28 = vld [vmem:[%s0 + $0xc] sm:$0xf]
    %v29 = vld [vmem:[%s0 + $0x10] sm:$0xf]
    %v30 = vld [vmem:[%s0 + $0x14] sm:$0xf]
    %v31 = vld [vmem:[%s0 + $0x18] sm:$0xf]
    %v32 = vld [vmem:[%s0 + $0x1c] sm:$0xf]
    %v33 = vld [vmem:[%s0 + $0x20] sm:$0xf]
    %v34 = vld [vmem:[%s0 + $0x24] sm:$0xf]
    %v35 = vld [vmem:[%s0 + $0x28] sm:$0xf]
    %v36 = vld [vmem:[%s0 + $0x2c] sm:$0xf]
    %v37 = vld [vmem:[%s0 + $0x30] sm:$0xf]
    %v38 = vld [vmem:[%s0 + $0x34] sm:$0xf]
    %v39 = vld [vmem:[%s0 + $0x38] sm:$0xf]
    %v40 = vld [vmem:[%s0 + $0x3c] sm:$0xf]
    %v41 = vld [vmem:[%s1] sm:$0xf]
    %v42 = vld [vmem:[%s1 + $0x4] sm:$0xf]
    %v43 = vld [vmem:[%s1 + $0x8] sm:$0xf]
    %v44 = vld [vmem:[%s1 + $0xc] sm:$0xf]
    %v45 = vld [vmem:[%s1 + $0x10] sm:$0xf]
    %v46 = vld [vmem:[%s1 + $0x14] sm:$0xf]
    %v47 = vld [vmem:[%s1 + $0x18] sm:$0xf]
    %v48 = vld [vmem:[%s1 + $0x1c] sm:$0xf]
    %v49 = vld [vmem:[%s1 + $0x20] sm:$0xf]
    %v50 = vld [vmem:[%s1 + $0x24] sm:$0xf]
    %v51 = vld [vmem:[%s1 + $0x28] sm:$0xf]
    %v52 = vld [vmem:[%s1 + $0x2c] sm:$0xf]
    %v53 = vld [vmem:[%s1 + $0x30] sm:$0xf]
    %v54 = vld [vmem:[%s1 + $0x34] sm:$0xf]
    %v55 = vld [vmem:[%s1 + $0x38] sm:$0xf]
    %v56 = vld [vmem:[%s1 + $0x3c] sm:$0xf]
    %v57 = vld [vmem:[%s2] sm:$0xf]
    %v58 = vld [vmem:[%s2 + $0x4] sm:$0xf]
    %v59 = vld [vmem:[%s2 + $0x8] sm:$0xf]
    %v60 = vld [vmem:[%s2 + $0xc] sm:$0xf]
    %v61 = vld [vmem:[%s2 + $0x10] sm:$0xf]
    %v62 = vld [vmem:[%s2 + $0x14] sm:$0xf]
    %v63 = vld [vmem:[%s3] sm:$0xff]
    %v80 = vunpack.c.l.b16 %v41
    %v81 = vunpack.c.l.b16 %v42
    %v82 = vunpack.c.l.b16 %v43
    %v83 = vunpack.c.l.b16 %v44
    %v84 = vunpack.c.l.b16 %v45
    %v85 = vunpack.c.l.b16 %v46
    %v86 = vunpack.c.l.b16 %v47
    %v87 = vunpack.c.l.b16 %v48
    %v88 = vunpack.c.l.b16 %v49
    %v89 = vunpack.c.l.b16 %v50
    %v90 = vunpack.c.l.b16 %v51
    %v91 = vunpack.c.l.b16 %v52
    %v92 = vunpack.c.l.b16 %v53
    %v93 = vunpack.c.l.b16 %v54
    %v94 = vunpack.c.l.b16 %v55
    %v95 = vunpack.c.l.b16 %v56
    %v96 = vpack.c.b16 %v81, %v80
    %v97 = vpack.c.b16 %v83, %v82
    %v98 = vpack.c.b16 %v85, %v84
    %v99 = vpack.c.b16 %v87, %v86
    %v100 = vpack.c.b16 %v89, %v88
    %v101 = vpack.c.b16 %v91, %v90
    %v102 = vpack.c.b16 %v93, %v92
    %v103 = vpack.c.b16 %v95, %v94
    %v106 = vunpack.c.l.b16 %v57
    %v107 = vunpack.c.l.b16 %v58
    %v108 = vpack.c.b16 %v107, %v106
    %vm110 = vcmask 130048
    %v112 = vsel %vm110, %v96, 0
    %v115 = vsel %vm110, %v97, 0
    %v118 = vsel %vm110, %v98, 0
    %v121 = vsel %vm110, %v99, 0
    %v124 = vsel %vm110, %v100, 0
    %v127 = vsel %vm110, %v101, 0
    %v130 = vsel %vm110, %v102, 0
    %v133 = vsel %vm110, %v103, 0
    %135 = vmatprep.subr.bf16.mxu0 0
    %136 = vmatpush1.bf16.msra.mxu0 %v108
    %137 = vmatprep.subr.bf16.mxu0 0
    %138 = vmatpush1.bf16.msra.mxu0 0
    %139 = vmatprep.subr.bf16.mxu0 0
    %140 = vmatpush1.bf16.msra.mxu0 0
    %141 = vmatprep.subr.bf16.mxu0 0
    %142 = vmatpush1.bf16.msra.mxu0 0
    %143 = vmatprep.subr.bf16.mxu0 0
    %144 = vmatpush1.bf16.msra.mxu0 0
    %145 = vmatprep.subr.bf16.mxu0 0
    %146 = vmatpush1.bf16.msra.mxu0 0
    %147 = vmatprep.subr.bf16.mxu0 0
    %148 = vmatpush1.bf16.msra.mxu0 0
    %149 = vmatprep.subr.bf16.mxu0 0
    %150 = vmatpush1.bf16.msra.mxu0 0
    %151 = vmatprep.subr.bf16.mxu0 0
    %152 = vmatpush1.bf16.msra.mxu0 0
    %153 = vmatprep.subr.bf16.mxu0 0
    %154 = vmatpush1.bf16.msra.mxu0 0
    %155 = vmatprep.subr.bf16.mxu0 0
    %156 = vmatpush1.bf16.msra.mxu0 0
    %157 = vmatprep.subr.bf16.mxu0 0
    %158 = vmatpush1.bf16.msra.mxu0 0
    %159 = vmatprep.subr.bf16.mxu0 0
    %160 = vmatpush1.bf16.msra.mxu0 0
    %161 = vmatprep.subr.bf16.mxu0 0
    %162 = vmatpush1.bf16.msra.mxu0 0
    %163 = vmatprep.subr.bf16.mxu0 0
    %164 = vmatpush1.bf16.msra.mxu0 0
    %165 = vmatprep.subr.bf16.mxu0 0
    %166 = vmatpush1.bf16.msra.mxu0 0
    %167 = vmatprep.mubr.bf16.mxu0 0
    %168 = vmatmul.mubr.bf16.gmra.mrb[0].mxu0 %v112
    %v169 = vpop.f32.mrb[0].mxu0
    %v170 = vadd.f32 0.0, %v169
    %v171 = vpop.f32.mrb[0].mxu0
    %v172 = vpop.f32.mrb[0].mxu0
    %v173 = vadd.f32 0.0, %v172
    %v174 = vpop.f32.mrb[0].mxu0
    %175 = vmatprep.mubr.bf16.mxu0 0
    %176 = vmatmul.mubr.bf16.gmra.mrb[0].mxu0 %v115
    %v177 = vpop.f32.mrb[0].mxu0
    %v178 = vadd.f32 0.0, %v177
    %v179 = vpop.f32.mrb[0].mxu0
    %v180 = vpop.f32.mrb[0].mxu0
    %v181 = vadd.f32 0.0, %v180
    %v182 = vpop.f32.mrb[0].mxu0
    %183 = vmatprep.mubr.bf16.mxu0 0
    %184 = vmatmul.mubr.bf16.gmra.mrb[0].mxu0 %v118
    %v185 = vpop.f32.mrb[0].mxu0
    %v186 = vadd.f32 0.0, %v185
    %v187 = vpop.f32.mrb[0].mxu0
    %v188 = vpop.f32.mrb[0].mxu0
    %v189 = vadd.f32 0.0, %v188
    %v190 = vpop.f32.mrb[0].mxu0
    %191 = vmatprep.mubr.bf16.mxu0 0
    %192 = vmatmul.mubr.bf16.gmra.mrb[0].mxu0 %v121
    %v193 = vpop.f32.mrb[0].mxu0
    %v194 = vadd.f32 0.0, %v193
    %v195 = vpop.f32.mrb[0].mxu0
    %v196 = vpop.f32.mrb[0].mxu0
    %v197 = vadd.f32 0.0, %v196
    %v198 = vpop.f32.mrb[0].mxu0
    %199 = vmatprep.mubr.bf16.mxu0 0
    %200 = vmatmul.mubr.bf16.gmra.mrb[0].mxu0 %v124
    %v201 = vpop.f32.mrb[0].mxu0
    %v202 = vadd.f32 0.0, %v201
    %v203 = vpop.f32.mrb[0].mxu0
    %v204 = vpop.f32.mrb[0].mxu0
    %v205 = vadd.f32 0.0, %v204
    %v206 = vpop.f32.mrb[0].mxu0
    %207 = vmatprep.mubr.bf16.mxu0 0
    %208 = vmatmul.mubr.bf16.gmra.mrb[0].mxu0 %v127
    %v209 = vpop.f32.mrb[0].mxu0
    %v210 = vadd.f32 0.0, %v209
    %v211 = vpop.f32.mrb[0].mxu0
    %v212 = vpop.f32.mrb[0].mxu0
    %v213 = vadd.f32 0.0, %v212
    %v214 = vpop.f32.mrb[0].mxu0
    %215 = vmatprep.mubr.bf16.mxu0 0
    %216 = vmatmul.mubr.bf16.gmra.mrb[0].mxu0 %v130
    %v217 = vpop.f32.mrb[0].mxu0
    %v218 = vadd.f32 0.0, %v217
    %v219 = vpop.f32.mrb[0].mxu0
    %v220 = vpop.f32.mrb[0].mxu0
    %v221 = vadd.f32 0.0, %v220
    %v222 = vpop.f32.mrb[0].mxu0
    %223 = vmatprep.mubr.bf16.mxu0 0
    %224 = vmatmul.mubr.bf16.gmra.mrb[0].mxu0 %v133
    %v225 = vpop.f32.mrb[0].mxu0
    %v226 = vadd.f32 0.0, %v225
    %v227 = vpop.f32.mrb[0].mxu0
    %v228 = vpop.f32.mrb[0].mxu0
    %v229 = vadd.f32 0.0, %v228
    %v230 = vpop.f32.mrb[0].mxu0
    %231 = vdwg.mxu0
    %v232 = vpack.c.bf16 %v173, %v170
    %v233 = vpack.c.bf16 %v181, %v178
    %v234 = vpack.c.bf16 %v189, %v186
    %v235 = vpack.c.bf16 %v197, %v194
    %v236 = vpack.c.bf16 %v205, %v202
    %v237 = vpack.c.bf16 %v213, %v210
    %v238 = vpack.c.bf16 %v221, %v218
    %v239 = vpack.c.bf16 %v229, %v226
    %v240 = vlaneseq
    %v241 = vshrl.u32 %v240, 7
    %v242 = vsub.s32 0, %v241
    %v243 = vrot.slane %v63, %v242
    %v260 = vunpack.c.l.b16 %v25
    %v261 = vunpack.c.l.b16 %v26
    %v262 = vunpack.c.l.b16 %v27
    %v263 = vunpack.c.l.b16 %v28
    %v264 = vunpack.c.l.b16 %v29
    %v265 = vunpack.c.l.b16 %v30
    %v266 = vunpack.c.l.b16 %v31
    %v267 = vunpack.c.l.b16 %v32
    %v268 = vunpack.c.l.b16 %v33
    %v269 = vunpack.c.l.b16 %v34
    %v270 = vunpack.c.l.b16 %v35
    %v271 = vunpack.c.l.b16 %v36
    %v272 = vunpack.c.l.b16 %v37
    %v273 = vunpack.c.l.b16 %v38
    %v274 = vunpack.c.l.b16 %v39
    %v275 = vunpack.c.l.b16 %v40
    %v276 = vpack.c.b16 %v261, %v260
    %v277 = vpack.c.b16 %v263, %v262
    %v278 = vpack.c.b16 %v265, %v264
    %v279 = vpack.c.b16 %v267, %v266
    %v280 = vpack.c.b16 %v269, %v268
    %v281 = vpack.c.b16 %v271, %v270
    %v282 = vpack.c.b16 %v273, %v272
    %v283 = vpack.c.b16 %v275, %v274
    %292 = vmatprep.subr.bf16.mxu0 0
    %293 = vmatpush1.bf16.msra.mxu0 %v232
    %294 = vmatprep.subr.bf16.mxu0 0
    %295 = vmatpush1.bf16.msra.mxu0 %v233
    %296 = vmatprep.subr.bf16.mxu0 0
    %297 = vmatpush1.bf16.msra.mxu0 %v234
    %298 = vmatprep.subr.bf16.mxu0 0
    %299 = vmatpush1.bf16.msra.mxu0 %v235
    %300 = vmatprep.subr.bf16.mxu0 0
    %301 = vmatpush1.bf16.msra.mxu0 %v236
    %302 = vmatprep.subr.bf16.mxu0 0
    %303 = vmatpush1.bf16.msra.mxu0 %v237
    %304 = vmatprep.subr.bf16.mxu0 0
    %305 = vmatpush1.bf16.msra.mxu0 %v238
    %306 = vmatprep.subr.bf16.mxu0 0
    %307 = vmatpush1.bf16.msra.mxu0 %v239
    %308 = vmatprep.subr.bf16.mxu0 0
    %309 = vmatpush1.bf16.msra.mxu0 0
    %310 = vmatprep.subr.bf16.mxu0 0
    %311 = vmatpush1.bf16.msra.mxu0 0
    %312 = vmatprep.subr.bf16.mxu0 0
    %313 = vmatpush1.bf16.msra.mxu0 0
    %314 = vmatprep.subr.bf16.mxu0 0
    %315 = vmatpush1.bf16.msra.mxu0 0
    %316 = vmatprep.subr.bf16.mxu0 0
    %317 = vmatpush1.bf16.msra.mxu0 0
    %318 = vmatprep.subr.bf16.mxu0 0
    %319 = vmatpush1.bf16.msra.mxu0 0
    %320 = vmatprep.subr.bf16.mxu0 0
    %321 = vmatpush1.bf16.msra.mxu0 0
    %322 = vmatprep.subr.bf16.mxu0 0
    %323 = vmatpush1.bf16.msra.mxu0 0
    %324 = vmatprep.mubr.bf16.mxu0 0
    %325 = vmatmul.mubr.bf16.gmra.mrb[0].mxu0 %v276
    %v326 = vpop.f32.mrb[0].mxu0
    %v327 = vadd.f32 %v243, %v326
    %v328 = vpop.f32.mrb[0].mxu0
    %v329 = vpop.f32.mrb[0].mxu0
    %v330 = vadd.f32 %v243, %v329
    %v331 = vpop.f32.mrb[0].mxu0
    %332 = vmatprep.mubr.bf16.mxu0 0
    %333 = vmatmul.mubr.bf16.gmra.mrb[0].mxu0 %v277
    %v334 = vpop.f32.mrb[0].mxu0
    %v335 = vadd.f32 %v243, %v334
    %v336 = vpop.f32.mrb[0].mxu0
    %v337 = vpop.f32.mrb[0].mxu0
    %v338 = vadd.f32 %v243, %v337
    %v339 = vpop.f32.mrb[0].mxu0
    %340 = vmatprep.mubr.bf16.mxu0 0
    %341 = vmatmul.mubr.bf16.gmra.mrb[0].mxu0 %v278
    %v342 = vpop.f32.mrb[0].mxu0
    %v343 = vadd.f32 %v243, %v342
    %v344 = vpop.f32.mrb[0].mxu0
    %v345 = vpop.f32.mrb[0].mxu0
    %v346 = vadd.f32 %v243, %v345
    %v347 = vpop.f32.mrb[0].mxu0
    %348 = vmatprep.mubr.bf16.mxu0 0
    %349 = vmatmul.mubr.bf16.gmra.mrb[0].mxu0 %v279
    %v350 = vpop.f32.mrb[0].mxu0
    %v351 = vadd.f32 %v243, %v350
    %v352 = vpop.f32.mrb[0].mxu0
    %v353 = vpop.f32.mrb[0].mxu0
    %v354 = vadd.f32 %v243, %v353
    %v355 = vpop.f32.mrb[0].mxu0
    %356 = vmatprep.mubr.bf16.mxu0 0
    %357 = vmatmul.mubr.bf16.gmra.mrb[0].mxu0 %v280
    %v358 = vpop.f32.mrb[0].mxu0
    %v359 = vadd.f32 %v243, %v358
    %v360 = vpop.f32.mrb[0].mxu0
    %v361 = vpop.f32.mrb[0].mxu0
    %v362 = vadd.f32 %v243, %v361
    %v363 = vpop.f32.mrb[0].mxu0
    %364 = vmatprep.mubr.bf16.mxu0 0
    %365 = vmatmul.mubr.bf16.gmra.mrb[0].mxu0 %v281
    %v366 = vpop.f32.mrb[0].mxu0
    %v367 = vadd.f32 %v243, %v366
    %v368 = vpop.f32.mrb[0].mxu0
    %v369 = vpop.f32.mrb[0].mxu0
    %v370 = vadd.f32 %v243, %v369
    %v371 = vpop.f32.mrb[0].mxu0
    %372 = vmatprep.mubr.bf16.mxu0 0
    %373 = vmatmul.mubr.bf16.gmra.mrb[0].mxu0 %v282
    %v374 = vpop.f32.mrb[0].mxu0
    %v375 = vadd.f32 %v243, %v374
    %v376 = vpop.f32.mrb[0].mxu0
    %v377 = vpop.f32.mrb[0].mxu0
    %v378 = vadd.f32 %v243, %v377
    %v379 = vpop.f32.mrb[0].mxu0
    %380 = vmatprep.mubr.bf16.mxu0 0
    %381 = vmatmul.mubr.bf16.gmra.mrb[0].mxu0 %v283
    %v382 = vpop.f32.mrb[0].mxu0
    %v383 = vadd.f32 %v243, %v382
    %v384 = vpop.f32.mrb[0].mxu0
    %v385 = vpop.f32.mrb[0].mxu0
    %v386 = vadd.f32 %v243, %v385
    %v387 = vpop.f32.mrb[0].mxu0
    %388 = vdwg.mxu0
    %v389 = vmax.f32 %v327, 0.0
    %v390 = vmax.f32 %v330, 0.0
    %v391 = vmax.f32 %v335, 0.0
    %v392 = vmax.f32 %v338, 0.0
    %v393 = vmax.f32 %v343, 0.0
    %v394 = vmax.f32 %v346, 0.0
    %v395 = vmax.f32 %v351, 0.0
    %v396 = vmax.f32 %v354, 0.0
    %v397 = vmax.f32 %v359, 0.0
    %v398 = vmax.f32 %v362, 0.0
    %v399 = vmax.f32 %v367, 0.0
    %v400 = vmax.f32 %v370, 0.0
    %v401 = vmax.f32 %v375, 0.0
    %v402 = vmax.f32 %v378, 0.0
    %v403 = vmax.f32 %v383, 0.0
    %v404 = vmax.f32 %v386, 0.0
    %v405 = vpack.c.bf16 %v390, %v389
    %v406 = vpack.c.bf16 %v392, %v391
    %v407 = vpack.c.bf16 %v394, %v393
    %v408 = vpack.c.bf16 %v396, %v395
    %v409 = vpack.c.bf16 %v398, %v397
    %v410 = vpack.c.bf16 %v400, %v399
    %v411 = vpack.c.bf16 %v402, %v401
    %v412 = vpack.c.bf16 %v404, %v403
    %v415 = vunpack.c.l.b16 %v59
    %v416 = vunpack.c.l.b16 %v60
    %v417 = vpack.c.b16 %v416, %v415
    %v420 = vsel %vm110, %v405, 0
    %v423 = vsel %vm110, %v406, 0
    %v426 = vsel %vm110, %v407, 0
    %v429 = vsel %vm110, %v408, 0
    %v432 = vsel %vm110, %v409, 0
    %v435 = vsel %vm110, %v410, 0
    %v438 = vsel %vm110, %v411, 0
    %v441 = vsel %vm110, %v412, 0
    %443 = vmatprep.subr.bf16.mxu0 0
    %444 = vmatpush1.bf16.msra.mxu0 %v417
    %445 = vmatprep.subr.bf16.mxu0 0
    %446 = vmatpush1.bf16.msra.mxu0 0
    %447 = vmatprep.subr.bf16.mxu0 0
    %448 = vmatpush1.bf16.msra.mxu0 0
    %449 = vmatprep.subr.bf16.mxu0 0
    %450 = vmatpush1.bf16.msra.mxu0 0
    %451 = vmatprep.subr.bf16.mxu0 0
    %452 = vmatpush1.bf16.msra.mxu0 0
    %453 = vmatprep.subr.bf16.mxu0 0
    %454 = vmatpush1.bf16.msra.mxu0 0
    %455 = vmatprep.subr.bf16.mxu0 0
    %456 = vmatpush1.bf16.msra.mxu0 0
    %457 = vmatprep.subr.bf16.mxu0 0
    %458 = vmatpush1.bf16.msra.mxu0 0
    %459 = vmatprep.subr.bf16.mxu0 0
    %460 = vmatpush1.bf16.msra.mxu0 0
    %461 = vmatprep.subr.bf16.mxu0 0
    %462 = vmatpush1.bf16.msra.mxu0 0
    %463 = vmatprep.subr.bf16.mxu0 0
    %464 = vmatpush1.bf16.msra.mxu0 0
    %465 = vmatprep.subr.bf16.mxu0 0
    %466 = vmatpush1.bf16.msra.mxu0 0
    %467 = vmatprep.subr.bf16.mxu0 0
    %468 = vmatpush1.bf16.msra.mxu0 0
    %469 = vmatprep.subr.bf16.mxu0 0
    %470 = vmatpush1.bf16.msra.mxu0 0
    %471 = vmatprep.subr.bf16.mxu0 0
    %472 = vmatpush1.bf16.msra.mxu0 0
    %473 = vmatprep.subr.bf16.mxu0 0
    %474 = vmatpush1.bf16.msra.mxu0 0
    %475 = vmatprep.mubr.bf16.mxu0 0
    %476 = vmatmul.mubr.bf16.gmra.mrb[0].mxu0 %v420
    %v477 = vpop.f32.mrb[0].mxu0
    %v478 = vadd.f32 0.0, %v477
    %v479 = vpop.f32.mrb[0].mxu0
    %v480 = vpop.f32.mrb[0].mxu0
    %v481 = vadd.f32 0.0, %v480
    %v482 = vpop.f32.mrb[0].mxu0
    %483 = vmatprep.mubr.bf16.mxu0 0
    %484 = vmatmul.mubr.bf16.gmra.mrb[0].mxu0 %v423
    %v485 = vpop.f32.mrb[0].mxu0
    %v486 = vadd.f32 0.0, %v485
    %v487 = vpop.f32.mrb[0].mxu0
    %v488 = vpop.f32.mrb[0].mxu0
    %v489 = vadd.f32 0.0, %v488
    %v490 = vpop.f32.mrb[0].mxu0
    %491 = vmatprep.mubr.bf16.mxu0 0
    %492 = vmatmul.mubr.bf16.gmra.mrb[0].mxu0 %v426
    %v493 = vpop.f32.mrb[0].mxu0
    %v494 = vadd.f32 0.0, %v493
    %v495 = vpop.f32.mrb[0].mxu0
    %v496 = vpop.f32.mrb[0].mxu0
    %v497 = vadd.f32 0.0, %v496
    %v498 = vpop.f32.mrb[0].mxu0
    %499 = vmatprep.mubr.bf16.mxu0 0
    %500 = vmatmul.mubr.bf16.gmra.mrb[0].mxu0 %v429
    %v501 = vpop.f32.mrb[0].mxu0
    %v502 = vadd.f32 0.0, %v501
    %v503 = vpop.f32.mrb[0].mxu0
    %v504 = vpop.f32.mrb[0].mxu0
    %v505 = vadd.f32 0.0, %v504
    %v506 = vpop.f32.mrb[0].mxu0
    %507 = vmatprep.mubr.bf16.mxu0 0
    %508 = vmatmul.mubr.bf16.gmra.mrb[0].mxu0 %v432
    %v509 = vpop.f32.mrb[0].mxu0
    %v510 = vadd.f32 0.0, %v509
    %v511 = vpop.f32.mrb[0].mxu0
    %v512 = vpop.f32.mrb[0].mxu0
    %v513 = vadd.f32 0.0, %v512
    %v514 = vpop.f32.mrb[0].mxu0
    %515 = vmatprep.mubr.bf16.mxu0 0
    %516 = vmatmul.mubr.bf16.gmra.mrb[0].mxu0 %v435
    %v517 = vpop.f32.mrb[0].mxu0
    %v518 = vadd.f32 0.0, %v517
    %v519 = vpop.f32.mrb[0].mxu0
    %v520 = vpop.f32.mrb[0].mxu0
    %v521 = vadd.f32 0.0, %v520
    %v522 = vpop.f32.mrb[0].mxu0
    %523 = vmatprep.mubr.bf16.mxu0 0
    %524 = vmatmul.mubr.bf16.gmra.mrb[0].mxu0 %v438
    %v525 = vpop.f32.mrb[0].mxu0
    %v526 = vadd.f32 0.0, %v525
    %v527 = vpop.f32.mrb[0].mxu0
    %v528 = vpop.f32.mrb[0].mxu0
    %v529 = vadd.f32 0.0, %v528
    %v530 = vpop.f32.mrb[0].mxu0
    %531 = vmatprep.mubr.bf16.mxu0 0
    %532 = vmatmul.mubr.bf16.gmra.mrb[0].mxu0 %v441
    %v533 = vpop.f32.mrb[0].mxu0
    %v534 = vadd.f32 0.0, %v533
    %v535 = vpop.f32.mrb[0].mxu0
    %v536 = vpop.f32.mrb[0].mxu0
    %v537 = vadd.f32 0.0, %v536
    %v538 = vpop.f32.mrb[0].mxu0
    %539 = vdwg.mxu0
    %v540 = vpack.c.bf16 %v481, %v478
    %v541 = vpack.c.bf16 %v489, %v486
    %v542 = vpack.c.bf16 %v497, %v494
    %v543 = vpack.c.bf16 %v505, %v502
    %v544 = vpack.c.bf16 %v513, %v510
    %v545 = vpack.c.bf16 %v521, %v518
    %v546 = vpack.c.bf16 %v529, %v526
    %v547 = vpack.c.bf16 %v537, %v534
    %v548 = vlaneseq
    %v549 = vshrl.u32 %v548, 7
    %v550 = vsub.s32 1, %v549
    %v551 = vrot.slane %v63, %v550
    %552 = vmatprep.subr.bf16.mxu0 0
    %553 = vmatpush1.bf16.msra.mxu0 %v540
    %554 = vmatprep.subr.bf16.mxu0 0
    %555 = vmatpush1.bf16.msra.mxu0 %v541
    %556 = vmatprep.subr.bf16.mxu0 0
    %557 = vmatpush1.bf16.msra.mxu0 %v542
    %558 = vmatprep.subr.bf16.mxu0 0
    %559 = vmatpush1.bf16.msra.mxu0 %v543
    %560 = vmatprep.subr.bf16.mxu0 0
    %561 = vmatpush1.bf16.msra.mxu0 %v544
    %562 = vmatprep.subr.bf16.mxu0 0
    %563 = vmatpush1.bf16.msra.mxu0 %v545
    %564 = vmatprep.subr.bf16.mxu0 0
    %565 = vmatpush1.bf16.msra.mxu0 %v546
    %566 = vmatprep.subr.bf16.mxu0 0
    %567 = vmatpush1.bf16.msra.mxu0 %v547
    %568 = vmatprep.subr.bf16.mxu0 0
    %569 = vmatpush1.bf16.msra.mxu0 0
    %570 = vmatprep.subr.bf16.mxu0 0
    %571 = vmatpush1.bf16.msra.mxu0 0
    %572 = vmatprep.subr.bf16.mxu0 0
    %573 = vmatpush1.bf16.msra.mxu0 0
    %574 = vmatprep.subr.bf16.mxu0 0
    %575 = vmatpush1.bf16.msra.mxu0 0
    %576 = vmatprep.subr.bf16.mxu0 0
    %577 = vmatpush1.bf16.msra.mxu0 0
    %578 = vmatprep.subr.bf16.mxu0 0
    %579 = vmatpush1.bf16.msra.mxu0 0
    %580 = vmatprep.subr.bf16.mxu0 0
    %581 = vmatpush1.bf16.msra.mxu0 0
    %582 = vmatprep.subr.bf16.mxu0 0
    %583 = vmatpush1.bf16.msra.mxu0 0
    %584 = vmatprep.mubr.bf16.mxu0 0
    %585 = vmatmul.mubr.bf16.gmra.mrb[0].mxu0 %v276
    %v586 = vpop.f32.mrb[0].mxu0
    %v587 = vadd.f32 %v551, %v586
    %v588 = vpop.f32.mrb[0].mxu0
    %v589 = vpop.f32.mrb[0].mxu0
    %v590 = vadd.f32 %v551, %v589
    %v591 = vpop.f32.mrb[0].mxu0
    %592 = vmatprep.mubr.bf16.mxu0 0
    %593 = vmatmul.mubr.bf16.gmra.mrb[0].mxu0 %v277
    %v594 = vpop.f32.mrb[0].mxu0
    %v595 = vadd.f32 %v551, %v594
    %v596 = vpop.f32.mrb[0].mxu0
    %v597 = vpop.f32.mrb[0].mxu0
    %v598 = vadd.f32 %v551, %v597
    %v599 = vpop.f32.mrb[0].mxu0
    %600 = vmatprep.mubr.bf16.mxu0 0
    %601 = vmatmul.mubr.bf16.gmra.mrb[0].mxu0 %v278
    %v602 = vpop.f32.mrb[0].mxu0
    %v603 = vadd.f32 %v551, %v602
    %v604 = vpop.f32.mrb[0].mxu0
    %v605 = vpop.f32.mrb[0].mxu0
    %v606 = vadd.f32 %v551, %v605
    %v607 = vpop.f32.mrb[0].mxu0
    %608 = vmatprep.mubr.bf16.mxu0 0
    %609 = vmatmul.mubr.bf16.gmra.mrb[0].mxu0 %v279
    %v610 = vpop.f32.mrb[0].mxu0
    %v611 = vadd.f32 %v551, %v610
    %v612 = vpop.f32.mrb[0].mxu0
    %v613 = vpop.f32.mrb[0].mxu0
    %v614 = vadd.f32 %v551, %v613
    %v615 = vpop.f32.mrb[0].mxu0
    %616 = vmatprep.mubr.bf16.mxu0 0
    %617 = vmatmul.mubr.bf16.gmra.mrb[0].mxu0 %v280
    %v618 = vpop.f32.mrb[0].mxu0
    %v619 = vadd.f32 %v551, %v618
    %v620 = vpop.f32.mrb[0].mxu0
    %v621 = vpop.f32.mrb[0].mxu0
    %v622 = vadd.f32 %v551, %v621
    %v623 = vpop.f32.mrb[0].mxu0
    %624 = vmatprep.mubr.bf16.mxu0 0
    %625 = vmatmul.mubr.bf16.gmra.mrb[0].mxu0 %v281
    %v626 = vpop.f32.mrb[0].mxu0
    %v627 = vadd.f32 %v551, %v626
    %v628 = vpop.f32.mrb[0].mxu0
    %v629 = vpop.f32.mrb[0].mxu0
    %v630 = vadd.f32 %v551, %v629
    %v631 = vpop.f32.mrb[0].mxu0
    %632 = vmatprep.mubr.bf16.mxu0 0
    %633 = vmatmul.mubr.bf16.gmra.mrb[0].mxu0 %v282
    %v634 = vpop.f32.mrb[0].mxu0
    %v635 = vadd.f32 %v551, %v634
    %v636 = vpop.f32.mrb[0].mxu0
    %v637 = vpop.f32.mrb[0].mxu0
    %v638 = vadd.f32 %v551, %v637
    %v639 = vpop.f32.mrb[0].mxu0
    %640 = vmatprep.mubr.bf16.mxu0 0
    %641 = vmatmul.mubr.bf16.gmra.mrb[0].mxu0 %v283
    %v642 = vpop.f32.mrb[0].mxu0
    %v643 = vadd.f32 %v551, %v642
    %v644 = vpop.f32.mrb[0].mxu0
    %v645 = vpop.f32.mrb[0].mxu0
    %v646 = vadd.f32 %v551, %v645
    %v647 = vpop.f32.mrb[0].mxu0
    %648 = vdwg.mxu0
    %v649 = vld [vmem:[%s4] sm:$0x3]
    %v650 = vpack.c.bf16 %v590, %v587
    %v651 = vpack.c.bf16 %v598, %v595
    %v652 = vpack.c.bf16 %v606, %v603
    %v653 = vpack.c.bf16 %v614, %v611
    %v654 = vpack.c.bf16 %v622, %v619
    %v655 = vpack.c.bf16 %v630, %v627
    %v656 = vpack.c.bf16 %v638, %v635
    %v657 = vpack.c.bf16 %v646, %v643
    %658 = vmatprep.subr.bf16.mxu0 0
    %659 = vmatpush1.bf16.msra.mxu0 %v650
    %660 = vmatprep.subr.bf16.mxu0 0
    %661 = vmatpush1.bf16.msra.mxu0 %v651
    %662 = vmatprep.subr.bf16.mxu0 0
    %663 = vmatpush1.bf16.msra.mxu0 %v652
    %664 = vmatprep.subr.bf16.mxu0 0
    %665 = vmatpush1.bf16.msra.mxu0 %v653
    %666 = vmatprep.subr.bf16.mxu0 0
    %667 = vmatpush1.bf16.msra.mxu0 %v654
    %668 = vmatprep.subr.bf16.mxu0 0
    %669 = vmatpush1.bf16.msra.mxu0 %v655
    %670 = vmatprep.subr.bf16.mxu0 0
    %671 = vmatpush1.bf16.msra.mxu0 %v656
    %672 = vmatprep.subr.bf16.mxu0 0
    %673 = vmatpush1.bf16.msra.mxu0 %v657
    %674 = vmatprep.subr.bf16.mxu0 0
    %675 = vmatpush1.bf16.msra.mxu0 0
    %676 = vmatprep.subr.bf16.mxu0 0
    %677 = vmatpush1.bf16.msra.mxu0 0
    %678 = vmatprep.subr.bf16.mxu0 0
    %679 = vmatpush1.bf16.msra.mxu0 0
    %680 = vmatprep.subr.bf16.mxu0 0
    %681 = vmatpush1.bf16.msra.mxu0 0
    %682 = vmatprep.subr.bf16.mxu0 0
    %683 = vmatpush1.bf16.msra.mxu0 0
    %684 = vmatprep.subr.bf16.mxu0 0
    %685 = vmatpush1.bf16.msra.mxu0 0
    %686 = vmatprep.subr.bf16.mxu0 0
    %687 = vmatpush1.bf16.msra.mxu0 0
    %688 = vmatprep.subr.bf16.mxu0 0
    %689 = vmatpush1.bf16.msra.mxu0 0
    %690 = vmatprep.mubr.bf16.mxu0 0
    %691 = vmatmul.mubr.bf16.gmra.mrb[0].mxu0 %v649
    %v692 = vpop.f32.mrb[0].mxu0
    %v693 = vadd.f32 0.0, %v692
    %v694 = vpop.f32.mrb[0].mxu0
    %v695 = vpop.f32.mrb[0].mxu0
    %v696 = vpop.f32.mrb[0].mxu0
    %697 = vdwg.mxu0
    %v698 = vld [vmem:[%s5] sm:$0xf]
    %700 = vset.pattern.permute.xlu0 0
    %701 = vperm.xlu0 %700, %v698
    %v702 = vpop.permute.xlu0 %701
    %v704 = vmul.f32 %v693, %v702
    %v705 = vpack.c.bf16 %v704, %v704
    %v706 = vlaneseq
    %v707 = vshrl.u32 %v706, 7
    %v708 = vsub.s32 2, %v707
    %v709 = vrot.slane %v63, %v708
    %v712 = vunpack.c.l.b16 %v61
    %v713 = vunpack.c.l.b16 %v62
    %v714 = vpack.c.b16 %v713, %v712
    %v717 = vsel %vm110, %v705, 0
    %719 = vmatprep.subr.bf16.mxu0 0
    %720 = vmatpush1.bf16.msra.mxu0 %v714
    %721 = vmatprep.subr.bf16.mxu0 0
    %722 = vmatpush1.bf16.msra.mxu0 0
    %723 = vmatprep.subr.bf16.mxu0 0
    %724 = vmatpush1.bf16.msra.mxu0 0
    %725 = vmatprep.subr.bf16.mxu0 0
    %726 = vmatpush1.bf16.msra.mxu0 0
    %727 = vmatprep.subr.bf16.mxu0 0
    %728 = vmatpush1.bf16.msra.mxu0 0
    %729 = vmatprep.subr.bf16.mxu0 0
    %730 = vmatpush1.bf16.msra.mxu0 0
    %731 = vmatprep.subr.bf16.mxu0 0
    %732 = vmatpush1.bf16.msra.mxu0 0
    %733 = vmatprep.subr.bf16.mxu0 0
    %734 = vmatpush1.bf16.msra.mxu0 0
    %735 = vmatprep.subr.bf16.mxu0 0
    %736 = vmatpush1.bf16.msra.mxu0 0
    %737 = vmatprep.subr.bf16.mxu0 0
    %738 = vmatpush1.bf16.msra.mxu0 0
    %739 = vmatprep.subr.bf16.mxu0 0
    %740 = vmatpush1.bf16.msra.mxu0 0
    %741 = vmatprep.subr.bf16.mxu0 0
    %742 = vmatpush1.bf16.msra.mxu0 0
    %743 = vmatprep.subr.bf16.mxu0 0
    %744 = vmatpush1.bf16.msra.mxu0 0
    %745 = vmatprep.subr.bf16.mxu0 0
    %746 = vmatpush1.bf16.msra.mxu0 0
    %747 = vmatprep.subr.bf16.mxu0 0
    %748 = vmatpush1.bf16.msra.mxu0 0
    %749 = vmatprep.subr.bf16.mxu0 0
    %750 = vmatpush1.bf16.msra.mxu0 0
    %751 = vmatprep.mubr.bf16.mxu0 0
    %752 = vmatmul.mubr.bf16.gmra.mrb[0].mxu0 %v717
    %v753 = vpop.f32.mrb[0].mxu0
    %v754 = vadd.f32 %v709, %v753
    %v755 = vpop.f32.mrb[0].mxu0
    %v756 = vpop.f32.mrb[0].mxu0
    %v757 = vpop.f32.mrb[0].mxu0
    %758 = vdwg.mxu0
    %vm759 = vcmask 125952
    %760 = vst.msk [vmem:[#allocation2] sm:$0xf] %vm759, %v754
    // Predicated region
    $region26: #{tpu_custom_call.1} parent=1 // pred_check
      _
    $region27: #{tpu_custom_call.1} parent=1 // pred_check_branch
      %762 = sbr.rel (0) target = $region29
    $region28: #{tpu_custom_call.1} parent=1 // pred_region
      %s764 = ssub.s32 64, 64
      %765 = vsyncadd [#allocation3], %s764
      %s767 = sshll.u32 [#allocation2], 4
      %s768 = int_to_ptr.vmem [resolvable:$true] %s767
      %770 = dma.vmem_to_hbm [thread:$0]  %s768, 64, %s6, [#allocation3]
    $region29: #{tpu_custom_call.1} parent=1 // pred_fallthru
      _
    // Predicated region
    $region30: #{tpu_custom_call.1} parent=1 // pred_check
      _
    $region31: #{tpu_custom_call.1} parent=1 // pred_check_branch
      %772 = sbr.rel (0) target = $region33
    $region32: #{tpu_custom_call.1} parent=1 // pred_region
      %773 = dma.done [#allocation3], 64
    $region33: #{tpu_custom_call.1} parent=1 // pred_fallthru
      _
    %774 = vsyncpa [#allocation3], 1

</llo_original>
